<compile_context>
chip_gen: v5e
topology: v5e:2x2
jax: 0.10.0
libtpu: 0.0.40
codegen_flags: <defaults>
</compile_context>

<pallas_src>
import functools
import math

import jax
import jax.numpy as jnp
from jax import lax
from jax.experimental import pallas as pl
from jax.experimental.pallas import tpu as pltpu


def rnn_kernel(x_ref, h0_ref, wih_ref, whh_ref, b_ref, wfc_ref, bfc_ref,
               out_ref, hid_ref):
    """Fused RNN recurrence + Linear + LogSoftmax.

    x_ref   : (T, I)    input sequence
    h0_ref  : (1, H)    initial hidden
    wih_ref : (I, H)    W_ih^T
    whh_ref : (H, H)    W_hh^T
    b_ref   : (1, H)    b_ih + b_hh
    wfc_ref : (H, OP)   W_fc^T, lane-padded to OP (zeros in padded columns)
    bfc_ref : (1, OP)   b_fc, lane-padded with -1e30 in padded columns
    out_ref : (T, OP)   log-softmax outputs (padded columns are garbage, sliced off outside)
    hid_ref : (1, H)    final hidden state
    """
    seq = x_ref.shape[0]
    whh = whh_ref[...]

    # Hoisted input projection + fused bias: one (T,I)@(I,H) MXU op.
    xp = jnp.dot(x_ref[...], wih_ref[...],
                 preferred_element_type=jnp.float32) + b_ref[...]

    # Fully unrolled serial recurrence; only (1,H)@(H,H) stays on the chain.
    # TODO(synk): could keep W_hh staged in MXU weight regs via
    # pltpu.matmul_push_rhs/acc_lhs/pop if the default lowering reloads it.
    h = h0_ref[...]
    hs = []
    for t in range(seq):
        h = jnp.tanh(xp[t:t + 1, :]
                     + jnp.dot(h, whh, preferred_element_type=jnp.float32))
        hs.append(h)
    hid_ref[...] = h

    # Stack hidden states in registers (no per-step VMEM scratch round-trip).
    hs_all = jnp.concatenate(hs, axis=0)                      # (T, H)

    # fc + log_softmax over the last dim (nn.LogSoftmax() on 2-D input -> dim=1).
    # Padded logit columns get weight 0 and bias -1e30, so they contribute ~0
    # to the logsumexp and never win the max.
    logits = (jnp.dot(hs_all, wfc_ref[...],
                      preferred_element_type=jnp.float32) + bfc_ref[...])
    m = jnp.max(logits, axis=-1, keepdims=True)
    z = logits - m
    lse = jnp.log(jnp.sum(jnp.exp(z), axis=-1, keepdims=True))
    out_ref[...] = z - lse                                    # (T, OP) unmasked store


@jax.jit
def rnn_forward(x, h0, w_ih, w_hh, b_ih, b_hh, w_fc, b_fc):
    """x: (T, 1, I) ; h0: (1, 1, H).  Returns (log_probs (T, O), hid (1, 1, H))."""
    T, _, I = x.shape
    H = h0.shape[-1]
    O = w_fc.shape[0]
    OP = ((O + 127) // 128) * 128                   # lane-dense output width

    f32 = jnp.float32
    x2 = x.reshape(T, I).astype(f32)
    h2 = h0.reshape(1, H).astype(f32)
    wih_t = jnp.transpose(w_ih).astype(f32)         # (I, H)
    whh_t = jnp.transpose(w_hh).astype(f32)         # (H, H)
    b = (b_ih + b_hh).reshape(1, H).astype(f32)     # (1, H)

    # Lane-pad the fc weights/bias: zero weights, very negative bias in the
    # padded columns so the softmax normalization is unaffected.
    wfc_t = jnp.transpose(w_fc).astype(f32)                                  # (H, O)
    wfc_p = jnp.zeros((H, OP), f32).at[:, :O].set(wfc_t)                     # (H, OP)
    bfc_p = jnp.full((1, OP), -1e30, f32).at[:, :O].set(
        b_fc.reshape(1, O).astype(f32))                                      # (1, OP)

    vmem_spec = pl.BlockSpec(memory_space=pltpu.MemorySpace.VMEM)

    out_p, hid = pl.pallas_call(
        rnn_kernel,
        out_shape=(
            jax.ShapeDtypeStruct((T, OP), f32),
            jax.ShapeDtypeStruct((1, H), f32),
        ),
        in_specs=[vmem_spec] * 7,
        out_specs=(vmem_spec, vmem_spec),
    )(x2, h2, wih_t, whh_t, b, wfc_p, bfc_p)

    return out_p[:, :O], hid.reshape(1, 1, H)


def ref_forward(x, h0, w_ih, w_hh, b_ih, b_hh, w_fc, b_fc):
    """Pure-JAX reference matching the PyTorch module (batch N=1)."""
    T, _, I = x.shape
    H = h0.shape[-1]
    x2 = x.reshape(T, I).astype(jnp.float32)

    def step(h, xt):
        h_new = jnp.tanh(xt @ w_ih.T + h @ w_hh.T + b_ih + b_hh)
        return h_new, h_new

    h_final, hs = lax.scan(step, h0.reshape(H).astype(jnp.float32), x2)
    logits = hs @ w_fc.T + b_fc
    return jax.nn.log_softmax(logits, axis=-1), h_final.reshape(1, 1, H)


def init_params(key, input_size, hidden_size, output_size):
    """Deterministic init mimicking PyTorch's U(-1/sqrt(H), 1/sqrt(H))."""
    ks = jax.random.split(key, 6)
    bound = 1.0 / math.sqrt(hidden_size)
    u = lambda k, shape: jax.random.uniform(k, shape, jnp.float32, -bound, bound)
    w_ih = u(ks[0], (hidden_size, input_size))
    w_hh = u(ks[1], (hidden_size, hidden_size))
    b_ih = u(ks[2], (hidden_size,))
    b_hh = u(ks[3], (hidden_size,))
    w_fc = u(ks[4], (output_size, hidden_size))
    b_fc = u(ks[5], (output_size,))
    return w_ih, w_hh, b_ih, b_hh, w_fc, b_fc


if __name__ == "__main__":
    input_size, hidden_size, output_size = 16, 32, 10
    seq_len = 8

    key = jax.random.PRNGKey(0)
    k_x, k_p = jax.random.split(key)

    x = jax.random.normal(k_x, (seq_len, 1, input_size), jnp.float32)
    h0 = jnp.zeros((1, 1, hidden_size), jnp.float32)     # initHidden()
    params = init_params(k_p, input_size, hidden_size, output_size)

    out, hid = rnn_forward(x, h0, *params)
    jax.block_until_ready((out, hid))

    assert out.shape == (seq_len, output_size)
    assert hid.shape == (1, 1, hidden_size)
    # log-softmax rows should sum to 1 in probability space
    assert jnp.allclose(jnp.sum(jnp.exp(out), axis=-1), 1.0, atol=1e-5)

    # Cross-check against a pure-JAX reference.
    ref_out, ref_hid = ref_forward(x, h0, *params)
    assert jnp.allclose(out, ref_out, atol=1e-5, rtol=1e-5)
    assert jnp.allclose(hid, ref_hid, atol=1e-5, rtol=1e-5)

    print("KERNEL_OK")
</pallas_src>

<mosaic_0001>
module attributes {stable_mosaic.version = 11 : i64} {
  func.func @rnn_kernel(%arg0: memref<8x16xf32, #tpu.memory_space<vmem>>, %arg1: memref<1x32xf32, #tpu.memory_space<vmem>>, %arg2: memref<16x32xf32, #tpu.memory_space<vmem>>, %arg3: memref<32x32xf32, #tpu.memory_space<vmem>>, %arg4: memref<1x32xf32, #tpu.memory_space<vmem>>, %arg5: memref<32x128xf32, #tpu.memory_space<vmem>>, %arg6: memref<1x128xf32, #tpu.memory_space<vmem>>, %arg7: memref<8x128xf32, #tpu.memory_space<vmem>>, %arg8: memref<1x32xf32, #tpu.memory_space<vmem>>) attributes {dimension_semantics = [], scalar_prefetch = 0 : i64, scratch_operands = 0 : i64, tpu.core_type = #tpu.core_type<tc>} {
    %c0 = arith.constant 0 : index
    %c0_0 = arith.constant 0 : index
    %0 = vector.load %arg3[%c0, %c0_0] : memref<32x32xf32, #tpu.memory_space<vmem>>, vector<32x32xf32>
    %c0_1 = arith.constant 0 : index
    %c0_2 = arith.constant 0 : index
    %1 = vector.load %arg0[%c0_1, %c0_2] : memref<8x16xf32, #tpu.memory_space<vmem>>, vector<8x16xf32>
    %c0_3 = arith.constant 0 : index
    %c0_4 = arith.constant 0 : index
    %2 = vector.load %arg2[%c0_3, %c0_4] : memref<16x32xf32, #tpu.memory_space<vmem>>, vector<16x32xf32>
    %cst = arith.constant dense<0.000000e+00> : vector<8x32xf32>
    %3 = tpu.matmul %1, %2, %cst {dimension_numbers = #tpu.dot_dimension_numbers<[1], [0], [0], [1], [0, 0, 1, 1], [], []>} : vector<8x16xf32>, vector<16x32xf32>, vector<8x32xf32> -> vector<8x32xf32>
    %c0_5 = arith.constant 0 : index
    %c0_6 = arith.constant 0 : index
    %4 = vector.load %arg4[%c0_5, %c0_6] : memref<1x32xf32, #tpu.memory_space<vmem>>, vector<1x32xf32>
    %5 = vector.broadcast %4 : vector<1x32xf32> to vector<8x32xf32>
    %6 = arith.addf %3, %5 : vector<8x32xf32>
    %c0_7 = arith.constant 0 : index
    %c0_8 = arith.constant 0 : index
    %7 = vector.load %arg1[%c0_7, %c0_8] : memref<1x32xf32, #tpu.memory_space<vmem>>, vector<1x32xf32>
    %8 = vector.extract_strided_slice %6 {offsets = [0, 0], sizes = [1, 32], strides = [1, 1]} : vector<8x32xf32> to vector<1x32xf32>
    %cst_9 = arith.constant dense<0.000000e+00> : vector<1x32xf32>
    %9 = tpu.matmul %7, %0, %cst_9 {dimension_numbers = #tpu.dot_dimension_numbers<[1], [0], [0], [1], [0, 0, 1, 1], [], []>} : vector<1x32xf32>, vector<32x32xf32>, vector<1x32xf32> -> vector<1x32xf32>
    %10 = arith.addf %8, %9 : vector<1x32xf32>
    %11 = math.tanh %10 : vector<1x32xf32>
    %12 = vector.extract_strided_slice %6 {offsets = [1, 0], sizes = [1, 32], strides = [1, 1]} : vector<8x32xf32> to vector<1x32xf32>
    %cst_10 = arith.constant dense<0.000000e+00> : vector<1x32xf32>
    %13 = tpu.matmul %11, %0, %cst_10 {dimension_numbers = #tpu.dot_dimension_numbers<[1], [0], [0], [1], [0, 0, 1, 1], [], []>} : vector<1x32xf32>, vector<32x32xf32>, vector<1x32xf32> -> vector<1x32xf32>
    %14 = arith.addf %12, %13 : vector<1x32xf32>
    %15 = math.tanh %14 : vector<1x32xf32>
    %16 = vector.extract_strided_slice %6 {offsets = [2, 0], sizes = [1, 32], strides = [1, 1]} : vector<8x32xf32> to vector<1x32xf32>
    %cst_11 = arith.constant dense<0.000000e+00> : vector<1x32xf32>
    %17 = tpu.matmul %15, %0, %cst_11 {dimension_numbers = #tpu.dot_dimension_numbers<[1], [0], [0], [1], [0, 0, 1, 1], [], []>} : vector<1x32xf32>, vector<32x32xf32>, vector<1x32xf32> -> vector<1x32xf32>
    %18 = arith.addf %16, %17 : vector<1x32xf32>
    %19 = math.tanh %18 : vector<1x32xf32>
    %20 = vector.extract_strided_slice %6 {offsets = [3, 0], sizes = [1, 32], strides = [1, 1]} : vector<8x32xf32> to vector<1x32xf32>
    %cst_12 = arith.constant dense<0.000000e+00> : vector<1x32xf32>
    %21 = tpu.matmul %19, %0, %cst_12 {dimension_numbers = #tpu.dot_dimension_numbers<[1], [0], [0], [1], [0, 0, 1, 1], [], []>} : vector<1x32xf32>, vector<32x32xf32>, vector<1x32xf32> -> vector<1x32xf32>
    %22 = arith.addf %20, %21 : vector<1x32xf32>
    %23 = math.tanh %22 : vector<1x32xf32>
    %24 = vector.extract_strided_slice %6 {offsets = [4, 0], sizes = [1, 32], strides = [1, 1]} : vector<8x32xf32> to vector<1x32xf32>
    %cst_13 = arith.constant dense<0.000000e+00> : vector<1x32xf32>
    %25 = tpu.matmul %23, %0, %cst_13 {dimension_numbers = #tpu.dot_dimension_numbers<[1], [0], [0], [1], [0, 0, 1, 1], [], []>} : vector<1x32xf32>, vector<32x32xf32>, vector<1x32xf32> -> vector<1x32xf32>
    %26 = arith.addf %24, %25 : vector<1x32xf32>
    %27 = math.tanh %26 : vector<1x32xf32>
    %28 = vector.extract_strided_slice %6 {offsets = [5, 0], sizes = [1, 32], strides = [1, 1]} : vector<8x32xf32> to vector<1x32xf32>
    %cst_14 = arith.constant dense<0.000000e+00> : vector<1x32xf32>
    %29 = tpu.matmul %27, %0, %cst_14 {dimension_numbers = #tpu.dot_dimension_numbers<[1], [0], [0], [1], [0, 0, 1, 1], [], []>} : vector<1x32xf32>, vector<32x32xf32>, vector<1x32xf32> -> vector<1x32xf32>
    %30 = arith.addf %28, %29 : vector<1x32xf32>
    %31 = math.tanh %30 : vector<1x32xf32>
    %32 = vector.extract_strided_slice %6 {offsets = [6, 0], sizes = [1, 32], strides = [1, 1]} : vector<8x32xf32> to vector<1x32xf32>
    %cst_15 = arith.constant dense<0.000000e+00> : vector<1x32xf32>
    %33 = tpu.matmul %31, %0, %cst_15 {dimension_numbers = #tpu.dot_dimension_numbers<[1], [0], [0], [1], [0, 0, 1, 1], [], []>} : vector<1x32xf32>, vector<32x32xf32>, vector<1x32xf32> -> vector<1x32xf32>
    %34 = arith.addf %32, %33 : vector<1x32xf32>
    %35 = math.tanh %34 : vector<1x32xf32>
    %36 = vector.extract_strided_slice %6 {offsets = [7, 0], sizes = [1, 32], strides = [1, 1]} : vector<8x32xf32> to vector<1x32xf32>
    %cst_16 = arith.constant dense<0.000000e+00> : vector<1x32xf32>
    %37 = tpu.matmul %35, %0, %cst_16 {dimension_numbers = #tpu.dot_dimension_numbers<[1], [0], [0], [1], [0, 0, 1, 1], [], []>} : vector<1x32xf32>, vector<32x32xf32>, vector<1x32xf32> -> vector<1x32xf32>
    %38 = arith.addf %36, %37 : vector<1x32xf32>
    %39 = math.tanh %38 : vector<1x32xf32>
    %c0_17 = arith.constant 0 : index
    %c0_18 = arith.constant 0 : index
    %40 = vector.load %arg8[%c0_17, %c0_18] : memref<1x32xf32, #tpu.memory_space<vmem>>, vector<1x32xf32>
    tpu.vector_store %arg8[%c0_17, %c0_18], %39 {strides = array<i32>} : memref<1x32xf32, #tpu.memory_space<vmem>>, vector<1x32xf32>,
    %41 = tpu.concatenate %11, %15, %19, %23, %27, %31, %35, %39 in 0 : vector<1x32xf32>, vector<1x32xf32>, vector<1x32xf32>, vector<1x32xf32>, vector<1x32xf32>, vector<1x32xf32>, vector<1x32xf32>, vector<1x32xf32> -> vector<8x32xf32>
    %c0_19 = arith.constant 0 : index
    %c0_20 = arith.constant 0 : index
    %42 = vector.load %arg5[%c0_19, %c0_20] : memref<32x128xf32, #tpu.memory_space<vmem>>, vector<32x128xf32>
    %cst_21 = arith.constant dense<0.000000e+00> : vector<8x128xf32>
    %43 = tpu.matmul %41, %42, %cst_21 {dimension_numbers = #tpu.dot_dimension_numbers<[1], [0], [0], [1], [0, 0, 1, 1], [], []>} : vector<8x32xf32>, vector<32x128xf32>, vector<8x128xf32> -> vector<8x128xf32>
    %c0_22 = arith.constant 0 : index
    %c0_23 = arith.constant 0 : index
    %44 = vector.load %arg6[%c0_22, %c0_23] : memref<1x128xf32, #tpu.memory_space<vmem>>, vector<1x128xf32>
    %45 = vector.broadcast %44 : vector<1x128xf32> to vector<8x128xf32>
    %46 = arith.addf %43, %45 : vector<8x128xf32>
    %cst_24 = arith.constant dense<0xFF800000> : vector<8xf32>
    %47 = vector.multi_reduction <maximumf>, %46, %cst_24 [1] : vector<8x128xf32> to vector<8xf32>
    %48 = vector.shape_cast %47 : vector<8xf32> to vector<8x1xf32>
    %49 = vector.broadcast %48 : vector<8x1xf32> to vector<8x128xf32>
    %50 = arith.subf %46, %49 : vector<8x128xf32>
    %51 = math.exp %50 : vector<8x128xf32>
    %cst_25 = arith.constant dense<0.000000e+00> : vector<8xf32>
    %52 = vector.multi_reduction <add>, %51, %cst_25 [1] : vector<8x128xf32> to vector<8xf32>
    %53 = vector.shape_cast %52 : vector<8xf32> to vector<8x1xf32>
    %54 = math.log %53 : vector<8x1xf32>
    %55 = vector.broadcast %54 : vector<8x1xf32> to vector<8x128xf32>
    %56 = arith.subf %50, %55 : vector<8x128xf32>
    %c0_26 = arith.constant 0 : index
    %c0_27 = arith.constant 0 : index
    %57 = vector.load %arg7[%c0_26, %c0_27] : memref<8x128xf32, #tpu.memory_space<vmem>>, vector<8x128xf32>
    tpu.vector_store %arg7[%c0_26, %c0_27], %56 {strides = array<i32>} : memref<8x128xf32, #tpu.memory_space<vmem>>, vector<8x128xf32>,
    return
  }
}

</mosaic_0001>

<llo_original>
// kernel: rnn_forward.1
$region0: #{rnn_forward.1}
  #allocation0 [shape = 'u32[]', space=smem, size = 0x4, offset = 0x4, fixed_abs, tag = 'smem constant byte address 0x4 - core index']
  #allocation1 [shape = 'u32[72,128]{1,0:T(1,128)}', space=vmem, size = 0x9000, scoped, tag = 'internal scratch']
  %s0 = inlined_call_operand.vmem [shape: f32[8,16], index: 0, kind: input, shape index: {}]
  %s1 = inlined_call_operand.vmem [shape: f32[1,32], index: 1, kind: input, shape index: {}]
  %s2 = inlined_call_operand.vmem [shape: f32[16,32], index: 2, kind: input, shape index: {}]
  %s3 = inlined_call_operand.vmem [shape: f32[32,32], index: 3, kind: input, shape index: {}]
  %s4 = inlined_call_operand.vmem [shape: f32[1,32], index: 4, kind: input, shape index: {}]
  %s5 = inlined_call_operand.vmem [shape: f32[32,128], index: 5, kind: input, shape index: {}]
  %s6 = inlined_call_operand.vmem [shape: f32[1,128], index: 6, kind: input, shape index: {}]
  %s7 = inlined_call_operand.hbm [shape: f32[8,128], index: 7, kind: output, shape index: {0}]
  %s8 = inlined_call_operand.hbm [shape: f32[1,32], index: 8, kind: output, shape index: {1}]
  %9 = xla_tuple %s7, %s8
  %s10 = sld [smem:[#allocation0]]
  $region46: #{rnn_forward.1} parent=0
    _
  %s12 = ssub.s32 1, %s10
  %s13 = scalar_select 0, %s12, %s10
  $region1: #{rnn_forward.1} parent=0
    #allocation2 [shape = 'u8[4096]{0}', space=vmem, size = 0x1000, scoped, tag = 'output window, operand 0, single buffered']
    #allocation3 [shape = 's32[1]{0}', space=sflag, size = 0x4, scoped, tag = 'scoped memory for rnn_forward.1']
    #allocation4 [shape = 'u8[512]{0}', space=vmem, size = 0x400, scoped, tag = 'output window, operand 1, single buffered']
    #allocation5 [shape = 's32[1]{0}', space=sflag, size = 0x4, scoped, tag = 'scoped memory for rnn_forward.1']
    %14 = vsyncpa [#allocation3], 0
    %15 = vsyncpa [#allocation5], 0
    // Predicated region
    $region2: #{rnn_forward.1} parent=1 // pred_check
      _
    $region3: #{rnn_forward.1} parent=1 // pred_check_branch
      %17 = sbr.rel (0) target = $region5
    $region4: #{rnn_forward.1} parent=1 // pred_region
      _
    $region5: #{rnn_forward.1} parent=1 // pred_fallthru
      _
    // Predicated region
    $region6: #{rnn_forward.1} parent=1 // pred_check
      _
    $region7: #{rnn_forward.1} parent=1 // pred_check_branch
      %19 = sbr.rel (0) target = $region9
    $region8: #{rnn_forward.1} parent=1 // pred_region
      _
    $region9: #{rnn_forward.1} parent=1 // pred_fallthru
      _
    // Predicated region
    $region10: #{rnn_forward.1} parent=1 // pred_check
      _
    $region11: #{rnn_forward.1} parent=1 // pred_check_branch
      %21 = sbr.rel (0) target = $region13
    $region12: #{rnn_forward.1} parent=1 // pred_region
      _
    $region13: #{rnn_forward.1} parent=1 // pred_fallthru
      _
    // Predicated region
    $region14: #{rnn_forward.1} parent=1 // pred_check
      _
    $region15: #{rnn_forward.1} parent=1 // pred_check_branch
      %23 = sbr.rel (0) target = $region17
    $region16: #{rnn_forward.1} parent=1 // pred_region
      _
    $region17: #{rnn_forward.1} parent=1 // pred_fallthru
      _
    // Predicated region
    $region18: #{rnn_forward.1} parent=1 // pred_check
      _
    $region19: #{rnn_forward.1} parent=1 // pred_check_branch
      %25 = sbr.rel (0) target = $region21
    $region20: #{rnn_forward.1} parent=1 // pred_region
      _
    $region21: #{rnn_forward.1} parent=1 // pred_fallthru
      _
    // Predicated region
    $region22: #{rnn_forward.1} parent=1 // pred_check
      _
    $region23: #{rnn_forward.1} parent=1 // pred_check_branch
      %27 = sbr.rel (0) target = $region25
    $region24: #{rnn_forward.1} parent=1 // pred_region
      _
    $region25: #{rnn_forward.1} parent=1 // pred_fallthru
      _
    // Predicated region
    $region26: #{rnn_forward.1} parent=1 // pred_check
      _
    $region27: #{rnn_forward.1} parent=1 // pred_check_branch
      %29 = sbr.rel (0) target = $region29
    $region28: #{rnn_forward.1} parent=1 // pred_region
      _
    $region29: #{rnn_forward.1} parent=1 // pred_fallthru
      _
    %v30 = vld [vmem:[%s3] sm:$0xff]
    %v31 = vld [vmem:[%s3 + $0x8] sm:$0xff]
    %v32 = vld [vmem:[%s3 + $0x10] sm:$0xff]
    %v33 = vld [vmem:[%s3 + $0x18] sm:$0xff]
    %v34 = vld [vmem:[%s0] sm:$0xff]
    %v35 = vld [vmem:[%s2] sm:$0xff]
    %v36 = vld [vmem:[%s2 + $0x8] sm:$0xff]
    %v37 = vld [vmem:[%s4] sm:$0x1]
    %v39 = vperm.slane %v37, 0
    %vm41 = vcmask 130048
    %v43 = vsel %vm41, %v34, 0
    %45 = vmatpush.msra.mxu0 0.0
    %46 = vmatpush.msra.mxu0 0.0
    %47 = vmatpush.msra.mxu0 0.0
    %48 = vmatpush.msra.mxu0 0.0
    %49 = vmatpush.msra.mxu0 0.0
    %50 = vmatpush.msra.mxu0 0.0
    %51 = vmatpush.msra.mxu0 0.0
    %52 = vmatpush.msra.mxu0 0.0
    %53 = vmatpush.msra.mxu0 0.0
    %54 = vmatpush.msra.mxu0 0.0
    %55 = vmatpush.msra.mxu0 0.0
    %56 = vmatpush.msra.mxu0 0.0
    %57 = vmatpush.msra.mxu0 0.0
    %58 = vmatpush.msra.mxu0 0.0
    %59 = vmatpush.msra.mxu0 %v36
    %60 = vmatpush.msra.mxu0 %v35
    %61 = vmatmul.f32.gmra.mxu0 %v43
    %v62 = vpop.f32.mrf.mxu0
    %v63 = vadd.f32 %v39, %v62
    %64 = vdwg.mxu0
    %v65 = vld [vmem:[%s1] sm:$0x1]
    %vm66 = vcmask 261120
    %v68 = vsel %vm66, %v65, 0
    %70 = vmatpush.msra.mxu0 0.0
    %71 = vmatpush.msra.mxu0 0.0
    %72 = vmatpush.msra.mxu0 0.0
    %73 = vmatpush.msra.mxu0 0.0
    %74 = vmatpush.msra.mxu0 0.0
    %75 = vmatpush.msra.mxu0 0.0
    %76 = vmatpush.msra.mxu0 0.0
    %77 = vmatpush.msra.mxu0 0.0
    %78 = vmatpush.msra.mxu0 0.0
    %79 = vmatpush.msra.mxu0 0.0
    %80 = vmatpush.msra.mxu0 0.0
    %81 = vmatpush.msra.mxu0 0.0
    %82 = vmatpush.msra.mxu0 %v33
    %83 = vmatpush.msra.mxu0 %v32
    %84 = vmatpush.msra.mxu0 %v31
    %85 = vmatpush.msra.mxu0 %v30
    %86 = vmatmul.f32.gmra.mxu0 %v68
    %v87 = vpop.f32.mrf.mxu0
    %v88 = vadd.f32 0.0, %v87
    %89 = vdwg.mxu0
    %v90 = vadd.f32 %v63, %v88
    %v91 = vtanh.pop %v90
    %v93 = vsel %vm66, %v91, 0
    %95 = vmatpush.msra.mxu0 0.0
    %96 = vmatpush.msra.mxu0 0.0
    %97 = vmatpush.msra.mxu0 0.0
    %98 = vmatpush.msra.mxu0 0.0
    %99 = vmatpush.msra.mxu0 0.0
    %100 = vmatpush.msra.mxu0 0.0
    %101 = vmatpush.msra.mxu0 0.0
    %102 = vmatpush.msra.mxu0 0.0
    %103 = vmatpush.msra.mxu0 0.0
    %104 = vmatpush.msra.mxu0 0.0
    %105 = vmatpush.msra.mxu0 0.0
    %106 = vmatpush.msra.mxu0 0.0
    %107 = vmatpush.msra.mxu0 %v33
    %108 = vmatpush.msra.mxu0 %v32
    %109 = vmatpush.msra.mxu0 %v31
    %110 = vmatpush.msra.mxu0 %v30
    %111 = vmatmul.f32.gmra.mxu0 %v93
    %v112 = vpop.f32.mrf.mxu0
    %v113 = vadd.f32 0.0, %v112
    %114 = vdwg.mxu0
    %v116 = vrot.slane %v113, 7
    %v118 = vadd.f32 %v63, %v116
    %v119 = vtanh.pop %v118
    %v121 = vrot.slane %v119, 1
    %v122 = vsel %vm66, %v121, 0
    %124 = vmatpush.msra.mxu0 0.0
    %125 = vmatpush.msra.mxu0 0.0
    %126 = vmatpush.msra.mxu0 0.0
    %127 = vmatpush.msra.mxu0 0.0
    %128 = vmatpush.msra.mxu0 0.0
    %129 = vmatpush.msra.mxu0 0.0
    %130 = vmatpush.msra.mxu0 0.0
    %131 = vmatpush.msra.mxu0 0.0
    %132 = vmatpush.msra.mxu0 0.0
    %133 = vmatpush.msra.mxu0 0.0
    %134 = vmatpush.msra.mxu0 0.0
    %135 = vmatpush.msra.mxu0 0.0
    %136 = vmatpush.msra.mxu0 %v33
    %137 = vmatpush.msra.mxu0 %v32
    %138 = vmatpush.msra.mxu0 %v31
    %139 = vmatpush.msra.mxu0 %v30
    %140 = vmatmul.f32.gmra.mxu0 %v122
    %v141 = vpop.f32.mrf.mxu0
    %v142 = vadd.f32 0.0, %v141
    %143 = vdwg.mxu0
    %v145 = vrot.slane %v142, 6
    %v147 = vadd.f32 %v63, %v145
    %v148 = vtanh.pop %v147
    %v150 = vrot.slane %v148, 2
    %v151 = vsel %vm66, %v150, 0
    %153 = vmatpush.msra.mxu0 0.0
    %154 = vmatpush.msra.mxu0 0.0
    %155 = vmatpush.msra.mxu0 0.0
    %156 = vmatpush.msra.mxu0 0.0
    %157 = vmatpush.msra.mxu0 0.0
    %158 = vmatpush.msra.mxu0 0.0
    %159 = vmatpush.msra.mxu0 0.0
    %160 = vmatpush.msra.mxu0 0.0
    %161 = vmatpush.msra.mxu0 0.0
    %162 = vmatpush.msra.mxu0 0.0
    %163 = vmatpush.msra.mxu0 0.0
    %164 = vmatpush.msra.mxu0 0.0
    %165 = vmatpush.msra.mxu0 %v33
    %166 = vmatpush.msra.mxu0 %v32
    %167 = vmatpush.msra.mxu0 %v31
    %168 = vmatpush.msra.mxu0 %v30
    %169 = vmatmul.f32.gmra.mxu0 %v151
    %v170 = vpop.f32.mrf.mxu0
    %v171 = vadd.f32 0.0, %v170
    %172 = vdwg.mxu0
    %v174 = vrot.slane %v171, 5
    %v176 = vadd.f32 %v63, %v174
    %v177 = vtanh.pop %v176
    %v179 = vrot.slane %v177, 3
    %v180 = vsel %vm66, %v179, 0
    %182 = vmatpush.msra.mxu0 0.0
    %183 = vmatpush.msra.mxu0 0.0
    %184 = vmatpush.msra.mxu0 0.0
    %185 = vmatpush.msra.mxu0 0.0
    %186 = vmatpush.msra.mxu0 0.0
    %187 = vmatpush.msra.mxu0 0.0
    %188 = vmatpush.msra.mxu0 0.0
    %189 = vmatpush.msra.mxu0 0.0
    %190 = vmatpush.msra.mxu0 0.0
    %191 = vmatpush.msra.mxu0 0.0
    %192 = vmatpush.msra.mxu0 0.0
    %193 = vmatpush.msra.mxu0 0.0
    %194 = vmatpush.msra.mxu0 %v33
    %195 = vmatpush.msra.mxu0 %v32
    %196 = vmatpush.msra.mxu0 %v31
    %197 = vmatpush.msra.mxu0 %v30
    %198 = vmatmul.f32.gmra.mxu0 %v180
    %v199 = vpop.f32.mrf.mxu0
    %v200 = vadd.f32 0.0, %v199
    %201 = vdwg.mxu0
    %v203 = vrot.slane %v200, 4
    %v205 = vadd.f32 %v63, %v203
    %v206 = vtanh.pop %v205
    %v208 = vrot.slane %v206, 4
    %v209 = vsel %vm66, %v208, 0
    %211 = vmatpush.msra.mxu0 0.0
    %212 = vmatpush.msra.mxu0 0.0
    %213 = vmatpush.msra.mxu0 0.0
    %214 = vmatpush.msra.mxu0 0.0
    %215 = vmatpush.msra.mxu0 0.0
    %216 = vmatpush.msra.mxu0 0.0
    %217 = vmatpush.msra.mxu0 0.0
    %218 = vmatpush.msra.mxu0 0.0
    %219 = vmatpush.msra.mxu0 0.0
    %220 = vmatpush.msra.mxu0 0.0
    %221 = vmatpush.msra.mxu0 0.0
    %222 = vmatpush.msra.mxu0 0.0
    %223 = vmatpush.msra.mxu0 %v33
    %224 = vmatpush.msra.mxu0 %v32
    %225 = vmatpush.msra.mxu0 %v31
    %226 = vmatpush.msra.mxu0 %v30
    %227 = vmatmul.f32.gmra.mxu0 %v209
    %v228 = vpop.f32.mrf.mxu0
    %v229 = vadd.f32 0.0, %v228
    %230 = vdwg.mxu0
    %v232 = vrot.slane %v229, 3
    %v234 = vadd.f32 %v63, %v232
    %v235 = vtanh.pop %v234
    %v237 = vrot.slane %v235, 5
    %v238 = vsel %vm66, %v237, 0
    %240 = vmatpush.msra.mxu0 0.0
    %241 = vmatpush.msra.mxu0 0.0
    %242 = vmatpush.msra.mxu0 0.0
    %243 = vmatpush.msra.mxu0 0.0
    %244 = vmatpush.msra.mxu0 0.0
    %245 = vmatpush.msra.mxu0 0.0
    %246 = vmatpush.msra.mxu0 0.0
    %247 = vmatpush.msra.mxu0 0.0
    %248 = vmatpush.msra.mxu0 0.0
    %249 = vmatpush.msra.mxu0 0.0
    %250 = vmatpush.msra.mxu0 0.0
    %251 = vmatpush.msra.mxu0 0.0
    %252 = vmatpush.msra.mxu0 %v33
    %253 = vmatpush.msra.mxu0 %v32
    %254 = vmatpush.msra.mxu0 %v31
    %255 = vmatpush.msra.mxu0 %v30
    %256 = vmatmul.f32.gmra.mxu0 %v238
    %v257 = vpop.f32.mrf.mxu0
    %v258 = vadd.f32 0.0, %v257
    %259 = vdwg.mxu0
    %v261 = vrot.slane %v258, 2
    %v263 = vadd.f32 %v63, %v261
    %v264 = vtanh.pop %v263
    %v266 = vrot.slane %v264, 6
    %v267 = vsel %vm66, %v266, 0
    %269 = vmatpush.msra.mxu0 0.0
    %270 = vmatpush.msra.mxu0 0.0
    %271 = vmatpush.msra.mxu0 0.0
    %272 = vmatpush.msra.mxu0 0.0
    %273 = vmatpush.msra.mxu0 0.0
    %274 = vmatpush.msra.mxu0 0.0
    %275 = vmatpush.msra.mxu0 0.0
    %276 = vmatpush.msra.mxu0 0.0
    %277 = vmatpush.msra.mxu0 0.0
    %278 = vmatpush.msra.mxu0 0.0
    %279 = vmatpush.msra.mxu0 0.0
    %280 = vmatpush.msra.mxu0 0.0
    %281 = vmatpush.msra.mxu0 %v33
    %282 = vmatpush.msra.mxu0 %v32
    %283 = vmatpush.msra.mxu0 %v31
    %284 = vmatpush.msra.mxu0 %v30
    %285 = vmatmul.f32.gmra.mxu0 %v267
    %v286 = vpop.f32.mrf.mxu0
    %v287 = vadd.f32 0.0, %v286
    %288 = vdwg.mxu0
    %v290 = vrot.slane %v287, 1
    %v292 = vadd.f32 %v63, %v290
    %v293 = vtanh.pop %v292
    %vm294 = vcmask 261127
    %295 = vst.msk [vmem:[#allocation4 - $0x7] sm:$0x80] %vm294, %v293
    %vm296 = vcmask 1040384
    %v297 = vsel %vm296, %v91, %v119
    %vm298 = vcmask 1041408
    %v299 = vsel %vm298, %v297, %v148
    %vm300 = vcmask 1042432
    %v301 = vsel %vm300, %v299, %v177
    %vm302 = vcmask 1043456
    %v303 = vsel %vm302, %v301, %v206
    %vm304 = vcmask 1044480
    %v305 = vsel %vm304, %v303, %v235
    %vm306 = vcmask 1045504
    %v307 = vsel %vm306, %v305, %v264
    %vm308 = vcmask 1046528
    %v309 = vsel %vm308, %v307, %v293
    %v310 = vld [vmem:[%s5] sm:$0xff]
    %v311 = vld [vmem:[%s5 + $0x8] sm:$0xff]
    %v312 = vld [vmem:[%s5 + $0x10] sm:$0xff]
    %v313 = vld [vmem:[%s5 + $0x18] sm:$0xff]
    %v314 = vld [vmem:[%s6] sm:$0x1]
    %v316 = vperm.slane %v314, 0
    %v319 = vsel %vm66, %v309, 0
    %321 = vmatpush.msra.mxu0 0.0
    %322 = vmatpush.msra.mxu0 0.0
    %323 = vmatpush.msra.mxu0 0.0
    %324 = vmatpush.msra.mxu0 0.0
    %325 = vmatpush.msra.mxu0 0.0
    %326 = vmatpush.msra.mxu0 0.0
    %327 = vmatpush.msra.mxu0 0.0
    %328 = vmatpush.msra.mxu0 0.0
    %329 = vmatpush.msra.mxu0 0.0
    %330 = vmatpush.msra.mxu0 0.0
    %331 = vmatpush.msra.mxu0 0.0
    %332 = vmatpush.msra.mxu0 0.0
    %333 = vmatpush.msra.mxu0 %v313
    %334 = vmatpush.msra.mxu0 %v312
    %335 = vmatpush.msra.mxu0 %v311
    %336 = vmatpush.msra.mxu0 %v310
    %337 = vmatmul.f32.gmra.mxu0 %v319
    %v338 = vpop.f32.mrf.mxu0
    %v339 = vadd.f32 %v316, %v338
    %340 = vdwg.mxu0
    %341 = vmax.xlane.f32.xlu0 %v339
    %v342 = vpop.xlane.xlu0 %341
    %v343 = vsub.f32 %v339, %v342
    %v344 = vmul.f32 %v343, 1.442695
    %v345 = vpow.pop %v344
    %346 = vadd.xlane.f32.xlu0 %v345
    %v347 = vpop.xlane.xlu0 %346
    %v348 = vlog2.pop %v347
    %v349 = vmul.f32 %v348, 0.6931472
    %v350 = vsub.f32 %v343, %v349
    %351 = vst [vmem:[#allocation2] sm:$0xff] %v350
    // Predicated region
    $region30: #{rnn_forward.1} parent=1 // pred_check
      _
    $region31: #{rnn_forward.1} parent=1 // pred_check_branch
      %353 = sbr.rel (0) target = $region33
    $region32: #{rnn_forward.1} parent=1 // pred_region
      %355 = vsyncadd [#allocation3], 0
      %s357 = sshll.u32 [#allocation2], 4
      %s358 = int_to_ptr.vmem [resolvable:$true] %s357
      %s359 = sshll.u32 %s7, 4
      %s360 = int_to_ptr.hbm [resolvable:$true] %s359
      %362 = dma.vmem_to_hbm [thread:$0]  %s358, 128, %s360, [#allocation3]
    $region33: #{rnn_forward.1} parent=1 // pred_fallthru
      _
    // Predicated region
    $region34: #{rnn_forward.1} parent=1 // pred_check
      _
    $region35: #{rnn_forward.1} parent=1 // pred_check_branch
      %364 = sbr.rel (0) target = $region37
    $region36: #{rnn_forward.1} parent=1 // pred_region
      %366 = vsyncadd [#allocation5], 0
      %s368 = sshll.u32 [#allocation4], 4
      %s369 = int_to_ptr.vmem [resolvable:$true] %s368
      %s370 = sshll.u32 %s8, 4
      %s371 = int_to_ptr.hbm [resolvable:$true] %s370
      %373 = dma.vmem_to_hbm [thread:$0]  %s369, 16, %s371, [#allocation5]
    $region37: #{rnn_forward.1} parent=1 // pred_fallthru
      _
    // Predicated region
    $region38: #{rnn_forward.1} parent=1 // pred_check
      _
    $region39: #{rnn_forward.1} parent=1 // pred_check_branch
      %375 = sbr.rel (0) target = $region41
    $region40: #{rnn_forward.1} parent=1 // pred_region
      %377 = dma.done [#allocation3], 128
    $region41: #{rnn_forward.1} parent=1 // pred_fallthru
      _
    // Predicated region
    $region42: #{rnn_forward.1} parent=1 // pred_check
      _
    $region43: #{rnn_forward.1} parent=1 // pred_check_branch
      %379 = sbr.rel (0) target = $region45
    $region44: #{rnn_forward.1} parent=1 // pred_region
      %381 = dma.done [#allocation5], 16
    $region45: #{rnn_forward.1} parent=1 // pred_fallthru
      _
    %382 = vsyncpa [#allocation3], 1
    %383 = vsyncpa [#allocation5], 1

</llo_original>
